<compile_context>
chip_gen: v7x
topology: tpu7x:2x2x1
jax: 0.10.0
libtpu: 0.0.40
codegen_flags: <defaults>
</compile_context>

<pallas_src>
import functools

import jax
import jax.numpy as jnp
from jax import lax
from jax.experimental import pallas as pl
from jax.experimental.pallas import tpu as pltpu

_BN_EPS = 1e-5


def _round_up(x, m):
    return (x + m - 1) // m * m


def _fc_score_time_kernel(n_hidden, t_ref, small_ref, wh_ref, wot_ref, bo_ref,
                          o_ref):
    """Fused forward for one batch tile (eval-mode BatchNorm folded in).

    t_ref:     (TB, 1)            f32   timestep column
    small_ref: (n_rows, H)        f32   packed per-feature rows:
                 row 0:             first-layer weight row (pre-scaled by BN1)
                 row 1:             first-layer fused shift
                 rows 2+2j / 3+2j:  hidden layer j BN scale / fused shift
    wh_ref:    (n_hidden, H, H)   bf16  hidden Linear weights, (in, out) layout
    wot_ref:   (out_pad, H)       bf16  output Linear weight, transposed + row-padded
    bo_ref:    (out_pad, 1)       f32   output bias column (row-padded)
    o_ref:     (out_pad, TB)      f32   transposed, compact output tile
    """
    t = t_ref[...]                                        # (TB, 1)

    w1 = small_ref[0:1, :]                                # (1, H)
    c1 = small_ref[1:2, :]
    # First layer has K=1: broadcasted VPU multiply-add, not a degenerate matmul.
    h = jnp.maximum(t * w1 + c1, 0.0)                     # (TB, H) f32

    for j in range(n_hidden):
        s = small_ref[2 + 2 * j:3 + 2 * j, :]             # BN scale
        c = small_ref[3 + 2 * j:4 + 2 * j, :]             # fused bias + BN shift
        y = jnp.dot(h.astype(jnp.bfloat16), wh_ref[j],    # bf16 x bf16 on the MXU
                    preferred_element_type=jnp.float32)   # (TB, H) f32
        h = jnp.maximum(y * s + c, 0.0)

    # Transposed head: out^T[d, b] = sum_k wo_t[d, k] * h[b, k]  (+ bias column).
    out_t = lax.dot_general(
        wot_ref[...], h.astype(jnp.bfloat16),
        dimension_numbers=(((1,), (1,)), ((), ())),
        preferred_element_type=jnp.float32)               # (out_pad, TB)
    o_ref[...] = (out_t + bo_ref[...]).astype(o_ref.dtype)


def prepare_params(params, *, data_dim=2, hidden_dim=128, n_hidden_layers=2):
    """One-time packing of module params into kernel-ready arrays (run once)."""
    H = hidden_dim
    out_dim = data_dim * 4
    out_pad = _round_up(out_dim, 8)

    (w1, b1), bn1, hidden, (wo, bo) = params
    assert len(hidden) == n_hidden_layers and n_hidden_layers >= 1

    def bn_fold(gamma, beta, mean, var):
        s = gamma / jnp.sqrt(var + _BN_EPS)
        return s, beta - mean * s

    s1, sh1 = bn_fold(*bn1)
    rows = [
        w1.reshape(-1).astype(jnp.float32) * s1,          # row 0: w1 * bn1 scale
        b1.astype(jnp.float32) * s1 + sh1,                # row 1: fused shift
    ]
    for (wj, bj), bnj in hidden:
        sj, shj = bn_fold(*bnj)
        rows.append(sj)
        rows.append(bj.astype(jnp.float32) * sj + shj)
    n_rows = _round_up(len(rows), 8)
    small = jnp.stack(rows).astype(jnp.float32)
    small = jnp.pad(small, ((0, n_rows - len(rows)), (0, 0)))          # (n_rows, H)

    wh = jnp.stack([wj for (wj, _), _ in hidden]).astype(jnp.bfloat16)  # (L, H, H)
    wo_t = jnp.zeros((out_pad, H), jnp.bfloat16).at[:out_dim, :].set(
        jnp.transpose(wo).astype(jnp.bfloat16))                        # (out_pad, H)
    bo_col = jnp.zeros((out_pad, 1), jnp.float32).at[:out_dim, 0].set(
        bo.astype(jnp.float32))                                        # (out_pad, 1)
    return small, wh, wo_t, bo_col


@functools.partial(jax.jit, static_argnames=("out_dim",))
def fc_score_model_time(t, small, wh, wo_t, bo_col, *, out_dim):
    """Pallas forward of FullConnectedScoreModel_time (eval-mode BatchNorm).

    t: (B,) or (B, 1) float32 -> (B, out_dim) float32.
    """
    n_rows, H = small.shape
    n_hidden = wh.shape[0]
    out_pad = wo_t.shape[0]
    assert out_dim <= out_pad

    t = jnp.asarray(t, jnp.float32).reshape(-1, 1)
    B = t.shape[0]
    B8 = _round_up(B, 8)

    # Batch tile: big enough to amortize per-grid-step overhead; a multiple of 128
    # (lane-dense output stores) with >=2 steps when B is large so both v7x
    # TensorCores get work.  A single small tile otherwise.
    if B8 <= 256:
        TB = B8
    elif B8 <= 2048:
        TB = _round_up(B8 // 2, 128)
    else:
        TB = 1024
    B_pad = _round_up(B8, TB)
    t_pad = jnp.zeros((B_pad, 1), jnp.float32).at[:B, :].set(t)

    kernel = functools.partial(_fc_score_time_kernel, n_hidden)

    out_t = pl.pallas_call(
        kernel,
        out_shape=jax.ShapeDtypeStruct((out_pad, B_pad), jnp.float32),
        grid=(B_pad // TB,),
        in_specs=[
            pl.BlockSpec((TB, 1), lambda i: (i, 0)),
            pl.BlockSpec((n_rows, H), lambda i: (0, 0)),
            pl.BlockSpec((n_hidden, H, H), lambda i: (0, 0, 0)),
            pl.BlockSpec((out_pad, H), lambda i: (0, 0)),
            pl.BlockSpec((out_pad, 1), lambda i: (0, 0)),
        ],
        out_specs=pl.BlockSpec((out_pad, TB), lambda i: (0, i)),
        compiler_params=pltpu.CompilerParams(
            dimension_semantics=("parallel",)),
    )(t_pad, small, wh, wo_t, bo_col)

    # Drop padded head rows and padded batch columns, then transpose (tiny).
    return out_t[:out_dim, :B].T


def init_params(key, data_dim=2, hidden_dim=128, n_hidden_layers=2):
    """Deterministic synthetic init.

    Linear weights are stored (in, out) so `x @ W + b` matches PyTorch's
    `x @ W.T + b` semantics for this synthetic init.  Hidden/output weights are
    kept in bfloat16 (the deployed parameter dtype); biases and BN params are f32.
    """
    H = hidden_dim
    out_dim = data_dim * 4

    def linear(k, fan_in, fan_out, wdtype=jnp.float32):
        kw, kb = jax.random.split(k)
        bound = 1.0 / jnp.sqrt(jnp.float32(fan_in))
        w = jax.random.uniform(kw, (fan_in, fan_out), jnp.float32, -bound, bound)
        b = jax.random.uniform(kb, (fan_out,), jnp.float32, -bound, bound)
        return w.astype(wdtype), b

    def bnorm(k, dim):
        kg, kb, km, kv = jax.random.split(k, 4)
        gamma = jax.random.uniform(kg, (dim,), jnp.float32, 0.5, 1.5)
        beta = jax.random.uniform(kb, (dim,), jnp.float32, -0.5, 0.5)
        mean = jax.random.uniform(km, (dim,), jnp.float32, -0.5, 0.5)
        var = jax.random.uniform(kv, (dim,), jnp.float32, 0.5, 1.5)
        return gamma, beta, mean, var

    keys = jax.random.split(key, 3 + 2 * n_hidden_layers)
    in_lin = linear(keys[0], 1, H)                     # first layer stays f32
    in_bn = bnorm(keys[1], H)
    hidden = []
    for j in range(n_hidden_layers):
        lin = linear(keys[2 + 2 * j], H, H, jnp.bfloat16)
        hidden.append((lin, bnorm(keys[3 + 2 * j], H)))
    wo, bo = linear(keys[-1], H, out_dim, jnp.bfloat16)
    return (in_lin, in_bn, tuple(hidden), (wo, bo))


def reference_forward(t, params, eps=_BN_EPS):
    """Pure-JAX forward matching the PyTorch module (eval-mode BatchNorm)."""
    (w1, b1), bn1, hidden, (wo, bo) = params

    def bn(x, gamma, beta, mean, var):
        return (x - mean) / jnp.sqrt(var + eps) * gamma + beta

    x = jnp.asarray(t, jnp.float32).reshape(-1, 1)
    x = jax.nn.relu(bn(x @ w1.astype(jnp.float32) + b1, *bn1))
    for (w, b), bnp in hidden:
        x = jax.nn.relu(bn(x @ w.astype(jnp.float32) + b, *bnp))
    return x @ wo.astype(jnp.float32) + bo


if __name__ == "__main__":
    DATA_DIM, HIDDEN_DIM, N_HIDDEN = 2, 128, 2
    OUT_DIM = DATA_DIM * 4
    B = 8

    key = jax.random.PRNGKey(0)
    key, kt = jax.random.split(key)
    t = jax.random.uniform(kt, (B,), jnp.float32, 0.0, 1.0)

    params = init_params(key, DATA_DIM, HIDDEN_DIM, N_HIDDEN)
    packed = prepare_params(
        params, data_dim=DATA_DIM, hidden_dim=HIDDEN_DIM,
        n_hidden_layers=N_HIDDEN)

    out = fc_score_model_time(t, *packed, out_dim=OUT_DIM)
    out = jax.block_until_ready(out)

    ref = reference_forward(t, params)
    assert out.shape == (B, OUT_DIM), out.shape
    max_err = float(jnp.max(jnp.abs(out - ref)))
    # bf16 activations feeding the MXU -> relax tolerance vs the f32 reference.
    assert jnp.allclose(out, ref, atol=5e-2, rtol=5e-2), max_err
    print("KERNEL_OK")
</pallas_src>

<mosaic_0001>
module attributes {stable_mosaic.version = 11 : i64} {
  func.func @_fc_score_time_kernel(%arg0: i32, %arg1: memref<8x1xf32, #tpu.memory_space<vmem>>, %arg2: memref<8x128xf32, #tpu.memory_space<vmem>>, %arg3: memref<2x128x128xbf16, #tpu.memory_space<vmem>>, %arg4: memref<8x128xbf16, #tpu.memory_space<vmem>>, %arg5: memref<8x1xf32, #tpu.memory_space<vmem>>, %arg6: memref<8x8xf32, #tpu.memory_space<vmem>>) attributes {dimension_semantics = [#tpu.dimension_semantics<parallel>], iteration_bounds = array<i64: 1>, scalar_prefetch = 0 : i64, scratch_operands = 0 : i64, tpu.core_type = #tpu.core_type<tc>, window_params = [{transform_indices = @transform_0, window_bounds = array<i64: 8, 1>}, {pipeline_mode = #tpu.pipeline_mode<synchronous>, transform_indices = @transform_1, window_bounds = array<i64: 8, 128>}, {pipeline_mode = #tpu.pipeline_mode<synchronous>, transform_indices = @transform_2, window_bounds = array<i64: 2, 128, 128>}, {pipeline_mode = #tpu.pipeline_mode<synchronous>, transform_indices = @transform_3, window_bounds = array<i64: 8, 128>}, {pipeline_mode = #tpu.pipeline_mode<synchronous>, transform_indices = @transform_4, window_bounds = array<i64: 8, 1>}, {transform_indices = @transform_5, window_bounds = array<i64: 8, 8>}]} {
    %c0 = arith.constant 0 : index
    %c0_0 = arith.constant 0 : index
    %0 = vector.load %arg1[%c0, %c0_0] : memref<8x1xf32, #tpu.memory_space<vmem>>, vector<8x1xf32>
    %c0_1 = arith.constant 0 : index
    %c0_2 = arith.constant 0 : index
    %1 = vector.load %arg2[%c0_1, %c0_2] : memref<8x128xf32, #tpu.memory_space<vmem>>, vector<1x128xf32>
    %c1 = arith.constant 1 : index
    %c0_3 = arith.constant 0 : index
    %2 = vector.load %arg2[%c1, %c0_3] : memref<8x128xf32, #tpu.memory_space<vmem>>, vector<1x128xf32>
    %3 = vector.broadcast %0 : vector<8x1xf32> to vector<8x128xf32>
    %4 = vector.broadcast %1 : vector<1x128xf32> to vector<8x128xf32>
    %5 = arith.mulf %3, %4 : vector<8x128xf32>
    %6 = vector.broadcast %2 : vector<1x128xf32> to vector<8x128xf32>
    %7 = arith.addf %5, %6 : vector<8x128xf32>
    %cst = arith.constant 0.000000e+00 : f32
    %8 = vector.broadcast %cst : f32 to vector<8x128xf32>
    %9 = arith.maximumf %7, %8 : vector<8x128xf32>
    %c2 = arith.constant 2 : index
    %c0_4 = arith.constant 0 : index
    %10 = vector.load %arg2[%c2, %c0_4] : memref<8x128xf32, #tpu.memory_space<vmem>>, vector<1x128xf32>
    %c3 = arith.constant 3 : index
    %c0_5 = arith.constant 0 : index
    %11 = vector.load %arg2[%c3, %c0_5] : memref<8x128xf32, #tpu.memory_space<vmem>>, vector<1x128xf32>
    %12 = arith.truncf %9 : vector<8x128xf32> to vector<8x128xbf16>
    %c0_6 = arith.constant 0 : index
    %c0_7 = arith.constant 0 : index
    %c0_8 = arith.constant 0 : index
    %13 = vector.load %arg3[%c0_6, %c0_7, %c0_8] : memref<2x128x128xbf16, #tpu.memory_space<vmem>>, vector<1x128x128xbf16>
    %14 = vector.shape_cast %13 : vector<1x128x128xbf16> to vector<128x128xbf16>
    %cst_9 = arith.constant dense<0.000000e+00> : vector<8x128xf32>
    %15 = tpu.matmul %12, %14, %cst_9 {dimension_numbers = #tpu.dot_dimension_numbers<[1], [0], [0], [1], [0, 0, 1, 1], [], []>} : vector<8x128xbf16>, vector<128x128xbf16>, vector<8x128xf32> -> vector<8x128xf32>
    %16 = vector.broadcast %10 : vector<1x128xf32> to vector<8x128xf32>
    %17 = arith.mulf %15, %16 : vector<8x128xf32>
    %18 = vector.broadcast %11 : vector<1x128xf32> to vector<8x128xf32>
    %19 = arith.addf %17, %18 : vector<8x128xf32>
    %cst_10 = arith.constant 0.000000e+00 : f32
    %20 = vector.broadcast %cst_10 : f32 to vector<8x128xf32>
    %21 = arith.maximumf %19, %20 : vector<8x128xf32>
    %c4 = arith.constant 4 : index
    %c0_11 = arith.constant 0 : index
    %22 = vector.load %arg2[%c4, %c0_11] : memref<8x128xf32, #tpu.memory_space<vmem>>, vector<1x128xf32>
    %c5 = arith.constant 5 : index
    %c0_12 = arith.constant 0 : index
    %23 = vector.load %arg2[%c5, %c0_12] : memref<8x128xf32, #tpu.memory_space<vmem>>, vector<1x128xf32>
    %24 = arith.truncf %21 : vector<8x128xf32> to vector<8x128xbf16>
    %c1_13 = arith.constant 1 : index
    %c0_14 = arith.constant 0 : index
    %c0_15 = arith.constant 0 : index
    %25 = vector.load %arg3[%c1_13, %c0_14, %c0_15] : memref<2x128x128xbf16, #tpu.memory_space<vmem>>, vector<1x128x128xbf16>
    %26 = vector.shape_cast %25 : vector<1x128x128xbf16> to vector<128x128xbf16>
    %cst_16 = arith.constant dense<0.000000e+00> : vector<8x128xf32>
    %27 = tpu.matmul %24, %26, %cst_16 {dimension_numbers = #tpu.dot_dimension_numbers<[1], [0], [0], [1], [0, 0, 1, 1], [], []>} : vector<8x128xbf16>, vector<128x128xbf16>, vector<8x128xf32> -> vector<8x128xf32>
    %28 = vector.broadcast %22 : vector<1x128xf32> to vector<8x128xf32>
    %29 = arith.mulf %27, %28 : vector<8x128xf32>
    %30 = vector.broadcast %23 : vector<1x128xf32> to vector<8x128xf32>
    %31 = arith.addf %29, %30 : vector<8x128xf32>
    %cst_17 = arith.constant 0.000000e+00 : f32
    %32 = vector.broadcast %cst_17 : f32 to vector<8x128xf32>
    %33 = arith.maximumf %31, %32 : vector<8x128xf32>
    %c0_18 = arith.constant 0 : index
    %c0_19 = arith.constant 0 : index
    %34 = vector.load %arg4[%c0_18, %c0_19] : memref<8x128xbf16, #tpu.memory_space<vmem>>, vector<8x128xbf16>
    %35 = arith.truncf %33 : vector<8x128xf32> to vector<8x128xbf16>
    %cst_20 = arith.constant dense<0.000000e+00> : vector<8x8xf32>
    %36 = tpu.matmul %34, %35, %cst_20 {dimension_numbers = #tpu.dot_dimension_numbers<[1], [1], [0], [0], [0, 0, 1, 0], [], []>} : vector<8x128xbf16>, vector<8x128xbf16>, vector<8x8xf32> -> vector<8x8xf32>
    %c0_21 = arith.constant 0 : index
    %c0_22 = arith.constant 0 : index
    %37 = vector.load %arg5[%c0_21, %c0_22] : memref<8x1xf32, #tpu.memory_space<vmem>>, vector<8x1xf32>
    %38 = vector.broadcast %37 : vector<8x1xf32> to vector<8x8xf32>
    %39 = arith.addf %36, %38 : vector<8x8xf32>
    %c0_23 = arith.constant 0 : index
    %c0_24 = arith.constant 0 : index
    %40 = vector.load %arg6[%c0_23, %c0_24] : memref<8x8xf32, #tpu.memory_space<vmem>>, vector<8x8xf32>
    tpu.vector_store %arg6[%c0_23, %c0_24], %39 {strides = array<i32>} : memref<8x8xf32, #tpu.memory_space<vmem>>, vector<8x8xf32>,
    return
  }
  func.func @transform_0(%arg0: i32) -> (i32, i32) {
    %c0_i32 = arith.constant 0 : i32
    %c0_i32_0 = arith.constant 0 : i32
    return %arg0, %c0_i32 : i32, i32
  }
  func.func @transform_1(%arg0: i32) -> (i32, i32) {
    %c0_i32 = arith.constant 0 : i32
    %c0_i32_0 = arith.constant 0 : i32
    %c0_i32_1 = arith.constant 0 : i32
    return %c0_i32, %c0_i32_0 : i32, i32
  }
  func.func @transform_2(%arg0: i32) -> (i32, i32, i32) {
    %c0_i32 = arith.constant 0 : i32
    %c0_i32_0 = arith.constant 0 : i32
    %c0_i32_1 = arith.constant 0 : i32
    %c0_i32_2 = arith.constant 0 : i32
    return %c0_i32, %c0_i32_0, %c0_i32_1 : i32, i32, i32
  }
  func.func @transform_3(%arg0: i32) -> (i32, i32) {
    %c0_i32 = arith.constant 0 : i32
    %c0_i32_0 = arith.constant 0 : i32
    %c0_i32_1 = arith.constant 0 : i32
    return %c0_i32, %c0_i32_0 : i32, i32
  }
  func.func @transform_4(%arg0: i32) -> (i32, i32) {
    %c0_i32 = arith.constant 0 : i32
    %c0_i32_0 = arith.constant 0 : i32
    %c0_i32_1 = arith.constant 0 : i32
    return %c0_i32, %c0_i32_0 : i32, i32
  }
  func.func @transform_5(%arg0: i32) -> (i32, i32) {
    %c0_i32 = arith.constant 0 : i32
    %c0_i32_0 = arith.constant 0 : i32
    return %c0_i32, %arg0 : i32, i32
  }
}

</mosaic_0001>

<llo_original>
// kernel: fc_score_model_time.1
$region0: #{fc_score_model_time.1}
  #allocation0 [shape = 'u32[]', space=smem, size = 0x4, offset = 0x4, fixed_abs, tag = 'smem constant byte address 0x4 - core index']
  #allocation1 [shape = 'u32[144,128]{1,0:T(1,128)}', space=vmem, size = 0x12000, scoped, tag = 'internal scratch']
  %s0 = inlined_call_operand.vmem [shape: f32[8,1], index: 0, kind: input, shape index: {}]
  %s1 = inlined_call_operand.vmem [shape: f32[8,128], index: 1, kind: input, shape index: {}]
  %s2 = inlined_call_operand.hbm [shape: bf16[2,128,128], index: 2, kind: input, shape index: {}]
  %s3 = inlined_call_operand.vmem [shape: bf16[8,128], index: 3, kind: input, shape index: {}]
  %s4 = inlined_call_operand.vmem [shape: f32[8,1], index: 4, kind: input, shape index: {}]
  %s5 = inlined_call_operand.vmem [shape: f32[8,8], index: 5, kind: output, shape index: {}]
  %s6 = sld [smem:[#allocation0]]
  $region34: #{fc_score_model_time.1} parent=0
    _
  %s8 = ssub.s32 1, %s6
  %s9 = scalar_select 0, %s8, %s6
  $region1: #{fc_score_model_time.1} parent=0
    #allocation2 [shape = 'u8[65536]{0}', space=vmem, size = 0x10000, scoped, tag = 'input window, operand 2, single buffered']
    #allocation3 [shape = 's32[1]{0}', space=sflag, size = 0x4, scoped, tag = 'scoped memory for fc_score_model_time.1']
    %10 = vsyncpa [#allocation3], 0
    // Predicated region
    $region2: #{fc_score_model_time.1} parent=1 // pred_check
      _
    $region3: #{fc_score_model_time.1} parent=1 // pred_check_branch
      %12 = sbr.rel (0) target = $region5
    $region4: #{fc_score_model_time.1} parent=1 // pred_region
      _
    $region5: #{fc_score_model_time.1} parent=1 // pred_fallthru
      _
    // Predicated region
    $region6: #{fc_score_model_time.1} parent=1 // pred_check
      _
    $region7: #{fc_score_model_time.1} parent=1 // pred_check_branch
      %14 = sbr.rel (0) target = $region9
    $region8: #{fc_score_model_time.1} parent=1 // pred_region
      _
    $region9: #{fc_score_model_time.1} parent=1 // pred_fallthru
      _
    // Predicated region
    $region10: #{fc_score_model_time.1} parent=1 // pred_check
      _
    $region11: #{fc_score_model_time.1} parent=1 // pred_check_branch
      %16 = sbr.rel (0) target = $region13
    $region12: #{fc_score_model_time.1} parent=1 // pred_region
      %s18 = ssub.s32 2048, 2048
      %19 = vsyncadd [#allocation3], %s18
      %s20 = sshll.u32 [#allocation2], 4
      %s21 = int_to_ptr.vmem [resolvable:$true] %s20
      %26 = dma.hbm_to_vmem [thread:$0]  %s2, 2048, %s21, [#allocation3], 64, 64, 4
    $region13: #{fc_score_model_time.1} parent=1 // pred_fallthru
      _
    // Predicated region
    $region14: #{fc_score_model_time.1} parent=1 // pred_check
      _
    $region15: #{fc_score_model_time.1} parent=1 // pred_check_branch
      %28 = sbr.rel (0) target = $region17
    $region16: #{fc_score_model_time.1} parent=1 // pred_region
      _
    $region17: #{fc_score_model_time.1} parent=1 // pred_fallthru
      _
    // Predicated region
    $region18: #{fc_score_model_time.1} parent=1 // pred_check
      _
    $region19: #{fc_score_model_time.1} parent=1 // pred_check_branch
      %30 = sbr.rel (0) target = $region21
    $region20: #{fc_score_model_time.1} parent=1 // pred_region
      _
    $region21: #{fc_score_model_time.1} parent=1 // pred_fallthru
      _
    // Predicated region
    $region22: #{fc_score_model_time.1} parent=1 // pred_check
      _
    $region23: #{fc_score_model_time.1} parent=1 // pred_check_branch
      %32 = sbr.rel (0) target = $region25
    $region24: #{fc_score_model_time.1} parent=1 // pred_region
      %33 = dma.done [#allocation3], 2048
    $region25: #{fc_score_model_time.1} parent=1 // pred_fallthru
      _
    %v35 = vld [vmem:[%s0] sm:$0xff]
    %v36 = vld [vmem:[%s1] sm:$0x1]
    %v37 = vld [vmem:[%s1 + $0x1] sm:$0x1]
    %39 = vset.pattern.permute.xlu0 0
    %40 = vperm.xlu0 %39, %v35
    %v41 = vpop.permute.xlu0 %40
    %v43 = vlaneseq
    %v44 = vshrl.u32 %v43, 7
    %v45 = vsub.s32 0, %v44
    %v46 = vrot.slane %v36, %v45
    %v47 = vmul.f32 %v41, %v46
    %v48 = vlaneseq
    %v49 = vshrl.u32 %v48, 7
    %v50 = vsub.s32 0, %v49
    %v51 = vrot.slane %v37, %v50
    %v52 = vadd.f32 %v47, %v51
    %v53 = vmax.f32 %v52, 0.0
    %v54 = vld [vmem:[%s1 + $0x2] sm:$0x1]
    %v55 = vld [vmem:[%s1 + $0x3] sm:$0x1]
    %v56 = vpack.c.bf16 %v53, %v53
    %v57 = vld [vmem:[#allocation2] sm:$0xf]
    %v58 = vld [vmem:[#allocation2 + $0x4] sm:$0xf]
    %v59 = vld [vmem:[#allocation2 + $0x8] sm:$0xf]
    %v60 = vld [vmem:[#allocation2 + $0xc] sm:$0xf]
    %v61 = vld [vmem:[#allocation2 + $0x10] sm:$0xf]
    %v62 = vld [vmem:[#allocation2 + $0x14] sm:$0xf]
    %v63 = vld [vmem:[#allocation2 + $0x18] sm:$0xf]
    %v64 = vld [vmem:[#allocation2 + $0x1c] sm:$0xf]
    %v65 = vld [vmem:[#allocation2 + $0x20] sm:$0xf]
    %v66 = vld [vmem:[#allocation2 + $0x24] sm:$0xf]
    %v67 = vld [vmem:[#allocation2 + $0x28] sm:$0xf]
    %v68 = vld [vmem:[#allocation2 + $0x2c] sm:$0xf]
    %v69 = vld [vmem:[#allocation2 + $0x30] sm:$0xf]
    %v70 = vld [vmem:[#allocation2 + $0x34] sm:$0xf]
    %v71 = vld [vmem:[#allocation2 + $0x38] sm:$0xf]
    %v72 = vld [vmem:[#allocation2 + $0x3c] sm:$0xf]
    %v89 = vunpack.c.l.b16 %v57
    %v90 = vunpack.c.l.b16 %v58
    %v91 = vunpack.c.l.b16 %v59
    %v92 = vunpack.c.l.b16 %v60
    %v93 = vunpack.c.l.b16 %v61
    %v94 = vunpack.c.l.b16 %v62
    %v95 = vunpack.c.l.b16 %v63
    %v96 = vunpack.c.l.b16 %v64
    %v97 = vunpack.c.l.b16 %v65
    %v98 = vunpack.c.l.b16 %v66
    %v99 = vunpack.c.l.b16 %v67
    %v100 = vunpack.c.l.b16 %v68
    %v101 = vunpack.c.l.b16 %v69
    %v102 = vunpack.c.l.b16 %v70
    %v103 = vunpack.c.l.b16 %v71
    %v104 = vunpack.c.l.b16 %v72
    %v105 = vpack.c.b16 %v90, %v89
    %v106 = vpack.c.b16 %v92, %v91
    %v107 = vpack.c.b16 %v94, %v93
    %v108 = vpack.c.b16 %v96, %v95
    %v109 = vpack.c.b16 %v98, %v97
    %v110 = vpack.c.b16 %v100, %v99
    %v111 = vpack.c.b16 %v102, %v101
    %v112 = vpack.c.b16 %v104, %v103
    %121 = vmatprep.subr.bf16.mxu0 0
    %122 = vmatpush1.bf16.msra.mxu0 %v105
    %123 = vmatprep.subr.bf16.mxu0 0
    %124 = vmatpush1.bf16.msra.mxu0 %v106
    %125 = vmatprep.subr.bf16.mxu0 0
    %126 = vmatpush1.bf16.msra.mxu0 %v107
    %127 = vmatprep.subr.bf16.mxu0 0
    %128 = vmatpush1.bf16.msra.mxu0 %v108
    %129 = vmatprep.subr.bf16.mxu0 0
    %130 = vmatpush1.bf16.msra.mxu0 %v109
    %131 = vmatprep.subr.bf16.mxu0 0
    %132 = vmatpush1.bf16.msra.mxu0 %v110
    %133 = vmatprep.subr.bf16.mxu0 0
    %134 = vmatpush1.bf16.msra.mxu0 %v111
    %135 = vmatprep.subr.bf16.mxu0 0
    %136 = vmatpush1.bf16.msra.mxu0 %v112
    %137 = vmatprep.subr.bf16.mxu0 0
    %138 = vmatpush1.bf16.msra.mxu0 0
    %139 = vmatprep.subr.bf16.mxu0 0
    %140 = vmatpush1.bf16.msra.mxu0 0
    %141 = vmatprep.subr.bf16.mxu0 0
    %142 = vmatpush1.bf16.msra.mxu0 0
    %143 = vmatprep.subr.bf16.mxu0 0
    %144 = vmatpush1.bf16.msra.mxu0 0
    %145 = vmatprep.subr.bf16.mxu0 0
    %146 = vmatpush1.bf16.msra.mxu0 0
    %147 = vmatprep.subr.bf16.mxu0 0
    %148 = vmatpush1.bf16.msra.mxu0 0
    %149 = vmatprep.subr.bf16.mxu0 0
    %150 = vmatpush1.bf16.msra.mxu0 0
    %151 = vmatprep.subr.bf16.mxu0 0
    %152 = vmatpush1.bf16.msra.mxu0 0
    %153 = vmatprep.mubr.bf16.mxu0 0
    %154 = vmatmul.mubr.bf16.gmra.mrb[0].mxu0 %v56
    %v155 = vpop.f32.mrb[0].mxu0
    %v156 = vadd.f32 0.0, %v155
    %v157 = vpop.f32.mrb[0].mxu0
    %v158 = vpop.f32.mrb[0].mxu0
    %v159 = vpop.f32.mrb[0].mxu0
    %160 = vdwg.mxu0
    %v161 = vlaneseq
    %v162 = vshrl.u32 %v161, 7
    %v163 = vsub.s32 0, %v162
    %v164 = vrot.slane %v54, %v163
    %v165 = vmul.f32 %v156, %v164
    %v166 = vlaneseq
    %v167 = vshrl.u32 %v166, 7
    %v168 = vsub.s32 0, %v167
    %v169 = vrot.slane %v55, %v168
    %v170 = vadd.f32 %v165, %v169
    %v171 = vmax.f32 %v170, 0.0
    %v172 = vld [vmem:[%s1 + $0x4] sm:$0x1]
    %v173 = vld [vmem:[%s1 + $0x5] sm:$0x1]
    %v174 = vpack.c.bf16 %v171, %v171
    %s175 = scalar_lea.vmem [#allocation2], 64
    %v176 = vld [vmem:[%s175] sm:$0xf]
    %v177 = vld [vmem:[%s175 + $0x4] sm:$0xf]
    %v178 = vld [vmem:[%s175 + $0x8] sm:$0xf]
    %v179 = vld [vmem:[%s175 + $0xc] sm:$0xf]
    %v180 = vld [vmem:[%s175 + $0x10] sm:$0xf]
    %v181 = vld [vmem:[%s175 + $0x14] sm:$0xf]
    %v182 = vld [vmem:[%s175 + $0x18] sm:$0xf]
    %v183 = vld [vmem:[%s175 + $0x1c] sm:$0xf]
    %v184 = vld [vmem:[%s175 + $0x20] sm:$0xf]
    %v185 = vld [vmem:[%s175 + $0x24] sm:$0xf]
    %v186 = vld [vmem:[%s175 + $0x28] sm:$0xf]
    %v187 = vld [vmem:[%s175 + $0x2c] sm:$0xf]
    %v188 = vld [vmem:[%s175 + $0x30] sm:$0xf]
    %v189 = vld [vmem:[%s175 + $0x34] sm:$0xf]
    %v190 = vld [vmem:[%s175 + $0x38] sm:$0xf]
    %v191 = vld [vmem:[%s175 + $0x3c] sm:$0xf]
    %v208 = vunpack.c.l.b16 %v176
    %v209 = vunpack.c.l.b16 %v177
    %v210 = vunpack.c.l.b16 %v178
    %v211 = vunpack.c.l.b16 %v179
    %v212 = vunpack.c.l.b16 %v180
    %v213 = vunpack.c.l.b16 %v181
    %v214 = vunpack.c.l.b16 %v182
    %v215 = vunpack.c.l.b16 %v183
    %v216 = vunpack.c.l.b16 %v184
    %v217 = vunpack.c.l.b16 %v185
    %v218 = vunpack.c.l.b16 %v186
    %v219 = vunpack.c.l.b16 %v187
    %v220 = vunpack.c.l.b16 %v188
    %v221 = vunpack.c.l.b16 %v189
    %v222 = vunpack.c.l.b16 %v190
    %v223 = vunpack.c.l.b16 %v191
    %v224 = vpack.c.b16 %v209, %v208
    %v225 = vpack.c.b16 %v211, %v210
    %v226 = vpack.c.b16 %v213, %v212
    %v227 = vpack.c.b16 %v215, %v214
    %v228 = vpack.c.b16 %v217, %v216
    %v229 = vpack.c.b16 %v219, %v218
    %v230 = vpack.c.b16 %v221, %v220
    %v231 = vpack.c.b16 %v223, %v222
    %240 = vmatprep.subr.bf16.mxu0 0
    %241 = vmatpush1.bf16.msra.mxu0 %v224
    %242 = vmatprep.subr.bf16.mxu0 0
    %243 = vmatpush1.bf16.msra.mxu0 %v225
    %244 = vmatprep.subr.bf16.mxu0 0
    %245 = vmatpush1.bf16.msra.mxu0 %v226
    %246 = vmatprep.subr.bf16.mxu0 0
    %247 = vmatpush1.bf16.msra.mxu0 %v227
    %248 = vmatprep.subr.bf16.mxu0 0
    %249 = vmatpush1.bf16.msra.mxu0 %v228
    %250 = vmatprep.subr.bf16.mxu0 0
    %251 = vmatpush1.bf16.msra.mxu0 %v229
    %252 = vmatprep.subr.bf16.mxu0 0
    %253 = vmatpush1.bf16.msra.mxu0 %v230
    %254 = vmatprep.subr.bf16.mxu0 0
    %255 = vmatpush1.bf16.msra.mxu0 %v231
    %256 = vmatprep.subr.bf16.mxu0 0
    %257 = vmatpush1.bf16.msra.mxu0 0
    %258 = vmatprep.subr.bf16.mxu0 0
    %259 = vmatpush1.bf16.msra.mxu0 0
    %260 = vmatprep.subr.bf16.mxu0 0
    %261 = vmatpush1.bf16.msra.mxu0 0
    %262 = vmatprep.subr.bf16.mxu0 0
    %263 = vmatpush1.bf16.msra.mxu0 0
    %264 = vmatprep.subr.bf16.mxu0 0
    %265 = vmatpush1.bf16.msra.mxu0 0
    %266 = vmatprep.subr.bf16.mxu0 0
    %267 = vmatpush1.bf16.msra.mxu0 0
    %268 = vmatprep.subr.bf16.mxu0 0
    %269 = vmatpush1.bf16.msra.mxu0 0
    %270 = vmatprep.subr.bf16.mxu0 0
    %271 = vmatpush1.bf16.msra.mxu0 0
    %272 = vmatprep.mubr.bf16.mxu0 0
    %273 = vmatmul.mubr.bf16.gmra.mrb[0].mxu0 %v174
    %v274 = vpop.f32.mrb[0].mxu0
    %v275 = vadd.f32 0.0, %v274
    %v276 = vpop.f32.mrb[0].mxu0
    %v277 = vpop.f32.mrb[0].mxu0
    %v278 = vpop.f32.mrb[0].mxu0
    %279 = vdwg.mxu0
    %v280 = vlaneseq
    %v281 = vshrl.u32 %v280, 7
    %v282 = vsub.s32 0, %v281
    %v283 = vrot.slane %v172, %v282
    %v284 = vmul.f32 %v275, %v283
    %v285 = vlaneseq
    %v286 = vshrl.u32 %v285, 7
    %v287 = vsub.s32 0, %v286
    %v288 = vrot.slane %v173, %v287
    %v289 = vadd.f32 %v284, %v288
    %v290 = vmax.f32 %v289, 0.0
    %v291 = vld [vmem:[%s3] sm:$0xf]
    %v292 = vpack.c.bf16 %v290, %v290
    %v293 = vld [vmem:[%s4] sm:$0xff]
    %295 = vset.pattern.permute.xlu0 0
    %296 = vperm.xlu0 %295, %v293
    %v297 = vpop.permute.xlu0 %296
    %299 = vmatprep.subr.bf16.mxu0 0
    %300 = vmatpush1.bf16.xpose.msra.mxu0 %v292
    %301 = vmatprep.subr.bf16.mxu0 0
    %302 = vmatpush1.bf16.xpose.msra.mxu0 0
    %303 = vmatprep.subr.bf16.mxu0 0
    %304 = vmatpush1.bf16.xpose.msra.mxu0 0
    %305 = vmatprep.subr.bf16.mxu0 0
    %306 = vmatpush1.bf16.xpose.msra.mxu0 0
    %307 = vmatprep.subr.bf16.mxu0 0
    %308 = vmatpush1.bf16.xpose.msra.mxu0 0
    %309 = vmatprep.subr.bf16.mxu0 0
    %310 = vmatpush1.bf16.xpose.msra.mxu0 0
    %311 = vmatprep.subr.bf16.mxu0 0
    %312 = vmatpush1.bf16.xpose.msra.mxu0 0
    %313 = vmatprep.subr.bf16.mxu0 0
    %314 = vmatpush1.bf16.xpose.msra.mxu0 0
    %315 = vmatprep.subr.bf16.mxu0 0
    %316 = vmatpush1.bf16.xpose.msra.mxu0 0
    %317 = vmatprep.subr.bf16.mxu0 0
    %318 = vmatpush1.bf16.xpose.msra.mxu0 0
    %319 = vmatprep.subr.bf16.mxu0 0
    %320 = vmatpush1.bf16.xpose.msra.mxu0 0
    %321 = vmatprep.subr.bf16.mxu0 0
    %322 = vmatpush1.bf16.xpose.msra.mxu0 0
    %323 = vmatprep.subr.bf16.mxu0 0
    %324 = vmatpush1.bf16.xpose.msra.mxu0 0
    %325 = vmatprep.subr.bf16.mxu0 0
    %326 = vmatpush1.bf16.xpose.msra.mxu0 0
    %327 = vmatprep.subr.bf16.mxu0 0
    %328 = vmatpush1.bf16.xpose.msra.mxu0 0
    %329 = vmatprep.subr.bf16.mxu0 0
    %330 = vmatpush1.bf16.xpose.msra.mxu0 0
    %331 = vmatprep.mubr.bf16.mxu0 0
    %332 = vmatmul.mubr.bf16.gmra.mrb[0].mxu0 %v291
    %v333 = vpop.f32.mrb[0].mxu0
    %v334 = vadd.f32 %v297, %v333
    %v335 = vpop.f32.mrb[0].mxu0
    %v336 = vpop.f32.mrb[0].mxu0
    %v337 = vpop.f32.mrb[0].mxu0
    %338 = vdwg.mxu0
    %vm339 = vcmask 64512
    %340 = vst.msk [vmem:[%s5] sm:$0xff] %vm339, %v334
    // Predicated region
    $region26: #{fc_score_model_time.1} parent=1 // pred_check
      _
    $region27: #{fc_score_model_time.1} parent=1 // pred_check_branch
      %342 = sbr.rel (0) target = $region29
    $region28: #{fc_score_model_time.1} parent=1 // pred_region
      _
    $region29: #{fc_score_model_time.1} parent=1 // pred_fallthru
      _
    // Predicated region
    $region30: #{fc_score_model_time.1} parent=1 // pred_check
      _
    $region31: #{fc_score_model_time.1} parent=1 // pred_check_branch
      %344 = sbr.rel (0) target = $region33
    $region32: #{fc_score_model_time.1} parent=1 // pred_region
      _
    $region33: #{fc_score_model_time.1} parent=1 // pred_fallthru
      _
    %345 = vsyncpa [#allocation3], 1

</llo_original>
